<compile_context>
chip_gen: v7x
topology: tpu7x:2x2x1
jax: 0.10.0
libtpu: 0.0.40
codegen_flags: <defaults>
</compile_context>

<pallas_src>
import functools
import math

import jax
import jax.numpy as jnp
from jax.experimental import pallas as pl
from jax.experimental.pallas import tpu as pltpu


# MXU input dtype for matmuls (accumulation is always f32). Set to jnp.float32 for
# bit-exact f32 matmuls (debugging); bf16 is the fast path on v5e/v6e/v7x.
MXU_DTYPE = jnp.bfloat16


def _pick_tile(dim, target, align):
    """Largest tile <= target that is a multiple of `align` and divides `dim`;
    falls back to the full dim (always legal for BlockSpec)."""
    if dim <= target:
        return dim
    t = (target // align) * align
    while t >= align:
        if dim % t == 0:
            return t
        t -= align
    return dim


# ----------------------------------------------------------------------------- kernels

def _matmul_bias_kernel(x_ref, w_ref, b_ref, o_ref, acc_ref, *, activation):
    @pl.when(pl.program_id(2) == 0)
    def _():
        acc_ref[...] = jnp.zeros_like(acc_ref)

    acc_ref[...] += jnp.dot(x_ref[...].astype(MXU_DTYPE),
                            w_ref[...].astype(MXU_DTYPE),
                            preferred_element_type=jnp.float32)

    @pl.when(pl.program_id(2) == pl.num_programs(2) - 1)
    def _():
        out = acc_ref[...] + b_ref[...]
        if activation == "relu":
            out = jnp.maximum(out, 0.0)
        o_ref[...] = out.astype(o_ref.dtype)


def _flash_attn_kernel(q_ref, k_ref, v_ref, m_ref, o_ref,
                       m_sc, l_sc, acc_sc, *, scale):
    ki = pl.program_id(2)

    @pl.when(ki == 0)
    def _():
        m_sc[...] = jnp.full_like(m_sc, -jnp.inf)
        l_sc[...] = jnp.zeros_like(l_sc)
        acc_sc[...] = jnp.zeros_like(acc_sc)

    q = q_ref[0]                                      # (H, tq, dh)
    k = k_ref[0]                                      # (H, tk, dh)
    v = v_ref[0]                                      # (H, tk, dh)

    # contract last dims of both operands -> no materialized transpose of k
    s = jnp.einsum('hqd,hkd->hqk', q.astype(MXU_DTYPE), k.astype(MXU_DTYPE),
                   preferred_element_type=jnp.float32) * scale
    s = s + m_ref[0, 0][None, :, :]                   # mask broadcast over heads (f32)

    m_prev = m_sc[...]
    m_new = jnp.maximum(m_prev, jnp.max(s, axis=-1, keepdims=True))
    alpha = jnp.exp(m_prev - m_new)
    p = jnp.exp(s - m_new)
    l_sc[...] = alpha * l_sc[...] + jnp.sum(p, axis=-1, keepdims=True)
    acc_sc[...] = alpha * acc_sc[...] + jnp.einsum(
        'hqk,hkd->hqd', p.astype(MXU_DTYPE), v.astype(MXU_DTYPE),
        preferred_element_type=jnp.float32)
    m_sc[...] = m_new

    @pl.when(ki == pl.num_programs(2) - 1)
    def _():
        o_ref[0] = (acc_sc[...] * pl.reciprocal(l_sc[...], approx=True)
                    ).astype(o_ref.dtype)


def _add_layernorm_kernel(x_ref, r_ref, g_ref, b_ref, o_ref, *, eps):
    x = x_ref[...] + r_ref[...]                       # fused residual add
    mu = jnp.mean(x, axis=-1, keepdims=True)
    xc = x - mu
    var = jnp.mean(xc * xc, axis=-1, keepdims=True)
    y = xc * jax.lax.rsqrt(var + eps)
    o_ref[...] = (y * g_ref[...] + b_ref[...]).astype(o_ref.dtype)


def _softmax_kernel(x_ref, o_ref):
    x = x_ref[...]
    x = x - jnp.max(x, axis=-1, keepdims=True)
    e = jnp.exp(x)
    o_ref[...] = (e / jnp.sum(e, axis=-1, keepdims=True)).astype(o_ref.dtype)


# ----------------------------------------------------------------------------- wrappers

def linear(x2d, w, b, activation=None):
    """x2d: (M, K) @ w: (K, N) + b: (N,) -> (M, N) f32, tiled + pipelined."""
    M, K = x2d.shape
    N = w.shape[1]
    tm = _pick_tile(M, 256, 8)
    tn = _pick_tile(N, 256, 128)
    tk = _pick_tile(K, 512, 128)
    grid = (M // tm, N // tn, K // tk)
    return pl.pallas_call(
        functools.partial(_matmul_bias_kernel, activation=activation),
        out_shape=jax.ShapeDtypeStruct((M, N), jnp.float32),
        grid=grid,
        in_specs=[pl.BlockSpec((tm, tk), lambda i, j, k: (i, k)),
                  pl.BlockSpec((tk, tn), lambda i, j, k: (k, j)),
                  pl.BlockSpec((1, tn), lambda i, j, k: (0, j))],
        out_specs=pl.BlockSpec((tm, tn), lambda i, j, k: (i, j)),
        scratch_shapes=[pltpu.VMEM((tm, tn), jnp.float32)],
        compiler_params=pltpu.CompilerParams(
            dimension_semantics=("parallel", "parallel", "arbitrary")),
    )(x2d, w, b.reshape(1, N))


def attention(q, k, v, mask):
    """q: (B, H, Sq, dh), k/v: (B, H, Sk, dh), mask: (B, 1, Mq, Sk) additive f32
    with Mq in {1, Sq}.  Flash-style online softmax over KV tiles."""
    B, H, Sq, dh = q.shape
    Sk = k.shape[2]
    Mq = mask.shape[2]
    tq = _pick_tile(Sq, 256, 8)
    tk = _pick_tile(Sk, 512, 128)
    scale = 1.0 / math.sqrt(dh)

    if Mq == 1:
        mask_spec = pl.BlockSpec((1, 1, 1, tk), lambda b, qi, ki: (b, 0, 0, ki))
    else:
        mask_spec = pl.BlockSpec((1, 1, tq, tk), lambda b, qi, ki: (b, 0, qi, ki))

    return pl.pallas_call(
        functools.partial(_flash_attn_kernel, scale=scale),
        out_shape=jax.ShapeDtypeStruct((B, H, Sq, dh), jnp.float32),
        grid=(B, Sq // tq, Sk // tk),
        in_specs=[pl.BlockSpec((1, H, tq, dh), lambda b, qi, ki: (b, 0, qi, 0)),
                  pl.BlockSpec((1, H, tk, dh), lambda b, qi, ki: (b, 0, ki, 0)),
                  pl.BlockSpec((1, H, tk, dh), lambda b, qi, ki: (b, 0, ki, 0)),
                  mask_spec],
        out_specs=pl.BlockSpec((1, H, tq, dh), lambda b, qi, ki: (b, 0, qi, 0)),
        scratch_shapes=[pltpu.VMEM((H, tq, 1), jnp.float32),
                        pltpu.VMEM((H, tq, 1), jnp.float32),
                        pltpu.VMEM((H, tq, dh), jnp.float32)],
        compiler_params=pltpu.CompilerParams(
            dimension_semantics=("parallel", "parallel", "arbitrary")),
    )(q, k, v, mask)


def add_layernorm(x2d, r2d, gamma, beta, eps=1e-5):
    """LayerNorm(x + r) row-tiled; residual add fused into the kernel."""
    M, D = x2d.shape
    tm = _pick_tile(M, 256, 8)
    return pl.pallas_call(
        functools.partial(_add_layernorm_kernel, eps=eps),
        out_shape=jax.ShapeDtypeStruct((M, D), jnp.float32),
        grid=(M // tm,),
        in_specs=[pl.BlockSpec((tm, D), lambda i: (i, 0)),
                  pl.BlockSpec((tm, D), lambda i: (i, 0)),
                  pl.BlockSpec((1, D), lambda i: (0, 0)),
                  pl.BlockSpec((1, D), lambda i: (0, 0))],
        out_specs=pl.BlockSpec((tm, D), lambda i: (i, 0)),
        compiler_params=pltpu.CompilerParams(dimension_semantics=("parallel",)),
    )(x2d, r2d, gamma.reshape(1, D), beta.reshape(1, D))


def softmax2d(x2d):
    M, N = x2d.shape
    tm = _pick_tile(M, 256, 8)
    return pl.pallas_call(
        _softmax_kernel,
        out_shape=jax.ShapeDtypeStruct((M, N), jnp.float32),
        grid=(M // tm,),
        in_specs=[pl.BlockSpec((tm, N), lambda i: (i, 0))],
        out_specs=pl.BlockSpec((tm, N), lambda i: (i, 0)),
        compiler_params=pltpu.CompilerParams(dimension_semantics=("parallel",)),
    )(x2d)


# ----------------------------------------------------------------------------- model glue

def _to_heads(t2d, B, S, n_heads, dh):
    return t2d.reshape(B, S, n_heads, dh).transpose(0, 2, 1, 3)     # (B,H,S,dh)


def mha_self(x, mask, p, n_heads):
    B, S, D = x.shape
    dh = D // n_heads
    qkv = linear(x.reshape(-1, D), p["wqkv"], p["bqkv"])            # fused QKV matmul
    q2d, k2d, v2d = jnp.split(qkv, 3, axis=-1)
    o = attention(_to_heads(q2d, B, S, n_heads, dh),
                  _to_heads(k2d, B, S, n_heads, dh),
                  _to_heads(v2d, B, S, n_heads, dh), mask)
    o2d = o.transpose(0, 2, 1, 3).reshape(B * S, D)
    return linear(o2d, p["wo"], p["bo"]).reshape(B, S, D)


def mha_cross(x_q, x_kv, mask, p, n_heads):
    B, Sq, D = x_q.shape
    Sk = x_kv.shape[1]
    dh = D // n_heads
    q2d = linear(x_q.reshape(-1, D), p["wq"], p["bq"])
    kv = linear(x_kv.reshape(-1, D), p["wkv"], p["bkv"])            # fused KV matmul
    k2d, v2d = jnp.split(kv, 2, axis=-1)
    o = attention(_to_heads(q2d, B, Sq, n_heads, dh),
                  _to_heads(k2d, B, Sk, n_heads, dh),
                  _to_heads(v2d, B, Sk, n_heads, dh), mask)
    o2d = o.transpose(0, 2, 1, 3).reshape(B * Sq, D)
    return linear(o2d, p["wo"], p["bo"]).reshape(B, Sq, D)


def encoder_layer(x, mask, p, n_heads):
    B, S, D = x.shape
    x2d = x.reshape(-1, D)
    a2d = mha_self(x, mask, p["attn"], n_heads).reshape(-1, D)
    x2d = add_layernorm(x2d, a2d, p["ln1_g"], p["ln1_b"])
    h = linear(x2d, p["w1"], p["b1"], activation="relu")
    f2d = linear(h, p["w2"], p["b2"])
    x2d = add_layernorm(x2d, f2d, p["ln2_g"], p["ln2_b"])
    return x2d.reshape(B, S, D)


def decoder_layer(x, self_mask, enc_out, cross_mask, p, n_heads):
    B, S, D = x.shape
    x2d = x.reshape(-1, D)
    a2d = mha_self(x, self_mask, p["self_attn"], n_heads).reshape(-1, D)
    x2d = add_layernorm(x2d, a2d, p["ln1_g"], p["ln1_b"])
    c2d = mha_cross(x2d.reshape(B, S, D), enc_out, cross_mask,
                    p["cross_attn"], n_heads).reshape(-1, D)
    x2d = add_layernorm(x2d, c2d, p["ln2_g"], p["ln2_b"])
    h = linear(x2d, p["w1"], p["b1"], activation="relu")
    f2d = linear(h, p["w2"], p["b2"])
    x2d = add_layernorm(x2d, f2d, p["ln3_g"], p["ln3_b"])
    return x2d.reshape(B, S, D)


def vanilla_transformer_forward(params, inputs, inputs_mask, targets, targets_mask):
    emb = params["embed"]              # (V, D)
    pe = params["pos"]                 # (max_len, D)
    D = emb.shape[1]
    V = params["exit_w"].shape[1]
    H = params["n_heads"]
    B, Ss = inputs.shape
    St = targets.shape[1]

    # --- encoder side -------------------------------------------------------
    h = jnp.take(emb, inputs, axis=0) + pe[None, :Ss, :]     # embedding gather: JAX glue
    # EmbeddingDropout: identity at inference.
    # masks stay un-broadcast: (B, 1, 1, Ss) — attention index_map handles heads/rows.
    enc_mask = jnp.where(inputs_mask[:, None, None, :], 0.0, -1e9).astype(jnp.float32)
    for lp in params["encoder"]:
        h = encoder_layer(h, enc_mask, lp, H)
    enc_out = h

    # --- decoder side -------------------------------------------------------
    h = jnp.take(emb, targets, axis=0) + pe[None, :St, :]
    causal = jnp.tril(jnp.ones((St, St), dtype=bool))
    self_keep = targets_mask[:, None, None, :] & causal[None, None, :, :]
    self_mask = jnp.where(self_keep, 0.0, -1e9).astype(jnp.float32)   # (B,1,St,St)
    cross_mask = enc_mask                                             # (B,1,1,Ss)
    for lp in params["decoder"]:
        h = decoder_layer(h, self_mask, enc_out, cross_mask, lp, H)

    logits2d = linear(h.reshape(-1, D), params["exit_w"], params["exit_b"])
    # TODO(synk): softmax could be fused into the exit matmul finalize when the vocab
    # axis is untiled; kept as a separate row-tiled kernel for generality.
    probas2d = softmax2d(logits2d)
    return probas2d.reshape(B, St, V), logits2d.reshape(B, St, V)


# ----------------------------------------------------------------------------- params

def init_params(key, *, vocab_size, embed_dim, n_heads, n_encoder_layers,
                n_decoder_layers, feedforward_dim, max_seq_len, pad_id=0):
    keys = list(jax.random.split(key, 512))
    it = iter(keys)

    def lin(shape):
        fan_in = shape[0]
        return (jax.random.normal(next(it), shape, jnp.float32) / math.sqrt(fan_in))

    def self_attn_p():
        wq, wk, wv = lin((embed_dim, embed_dim)), lin((embed_dim, embed_dim)), lin((embed_dim, embed_dim))
        return {"wqkv": jnp.concatenate([wq, wk, wv], axis=1),
                "bqkv": jnp.zeros((3 * embed_dim,), jnp.float32),
                "wo": lin((embed_dim, embed_dim)),
                "bo": jnp.zeros((embed_dim,), jnp.float32)}

    def cross_attn_p():
        wk, wv = lin((embed_dim, embed_dim)), lin((embed_dim, embed_dim))
        return {"wq": lin((embed_dim, embed_dim)),
                "bq": jnp.zeros((embed_dim,), jnp.float32),
                "wkv": jnp.concatenate([wk, wv], axis=1),
                "bkv": jnp.zeros((2 * embed_dim,), jnp.float32),
                "wo": lin((embed_dim, embed_dim)),
                "bo": jnp.zeros((embed_dim,), jnp.float32)}

    def enc_layer_p():
        return {"attn": self_attn_p(),
                "ln1_g": jnp.ones((embed_dim,), jnp.float32), "ln1_b": jnp.zeros((embed_dim,), jnp.float32),
                "w1": lin((embed_dim, feedforward_dim)), "b1": jnp.zeros((feedforward_dim,), jnp.float32),
                "w2": lin((feedforward_dim, embed_dim)), "b2": jnp.zeros((embed_dim,), jnp.float32),
                "ln2_g": jnp.ones((embed_dim,), jnp.float32), "ln2_b": jnp.zeros((embed_dim,), jnp.float32)}

    def dec_layer_p():
        return {"self_attn": self_attn_p(),
                "ln1_g": jnp.ones((embed_dim,), jnp.float32), "ln1_b": jnp.zeros((embed_dim,), jnp.float32),
                "cross_attn": cross_attn_p(),
                "ln2_g": jnp.ones((embed_dim,), jnp.float32), "ln2_b": jnp.zeros((embed_dim,), jnp.float32),
                "w1": lin((embed_dim, feedforward_dim)), "b1": jnp.zeros((feedforward_dim,), jnp.float32),
                "w2": lin((feedforward_dim, embed_dim)), "b2": jnp.zeros((embed_dim,), jnp.float32),
                "ln3_g": jnp.ones((embed_dim,), jnp.float32), "ln3_b": jnp.zeros((embed_dim,), jnp.float32)}

    embed = jax.random.normal(next(it), (vocab_size, embed_dim), jnp.float32) * 0.02
    embed = embed.at[pad_id].set(0.0)  # padding_idx

    # sinusoidal positional embedding table
    pos = jnp.arange(max_seq_len, dtype=jnp.float32)[:, None]
    i = jnp.arange(embed_dim // 2, dtype=jnp.float32)[None, :]
    angle = pos / jnp.power(10000.0, 2.0 * i / embed_dim)
    pe = jnp.zeros((max_seq_len, embed_dim), jnp.float32)
    pe = pe.at[:, 0::2].set(jnp.sin(angle))
    pe = pe.at[:, 1::2].set(jnp.cos(angle))

    return {"embed": embed, "pos": pe, "n_heads": n_heads,
            "encoder": [enc_layer_p() for _ in range(n_encoder_layers)],
            "decoder": [dec_layer_p() for _ in range(n_decoder_layers)],
            "exit_w": lin((embed_dim, vocab_size)),
            "exit_b": jnp.zeros((vocab_size,), jnp.float32)}


# ----------------------------------------------------------------------------- main

if __name__ == "__main__":
    # small but representative config
    VOCAB, D, H, N_ENC, N_DEC, FF, MAX_LEN, PAD = 128, 32, 4, 2, 2, 64, 16, 0
    B, S_SRC, S_TGT = 2, 8, 8

    key = jax.random.PRNGKey(0)
    k_par, k_in, k_tg = jax.random.split(key, 3)
    params = init_params(k_par, vocab_size=VOCAB, embed_dim=D, n_heads=H,
                         n_encoder_layers=N_ENC, n_decoder_layers=N_DEC,
                         feedforward_dim=FF, max_seq_len=MAX_LEN, pad_id=PAD)

    inputs = jax.random.randint(k_in, (B, S_SRC), 1, VOCAB, dtype=jnp.int32)
    targets = jax.random.randint(k_tg, (B, S_TGT), 1, VOCAB, dtype=jnp.int32)
    # add some padding at the end of the second sequence of each batch element
    inputs = inputs.at[1, -2:].set(PAD)
    targets = targets.at[1, -1:].set(PAD)
    inputs_mask = inputs != PAD     # (B, S_SRC) bool, True = real token
    targets_mask = targets != PAD   # (B, S_TGT) bool

    probas, logits = vanilla_transformer_forward(params, inputs, inputs_mask,
                                                 targets, targets_mask)
    jax.block_until_ready((probas, logits))

    assert probas.shape == (B, S_TGT, VOCAB) and logits.shape == (B, S_TGT, VOCAB)
    assert bool(jnp.all(jnp.isfinite(logits)))
    assert bool(jnp.allclose(jnp.sum(probas, axis=-1), 1.0, atol=1e-4))
    # TODO(synk): Dropout / EmbeddingDropout are identity (inference); train-mode RNG dropout not implemented.
    print("KERNEL_OK")
</pallas_src>

<mosaic_0001>
module attributes {stable_mosaic.version = 11 : i64} {
  func.func @_matmul_bias_kernel(%arg0: i32, %arg1: i32, %arg2: i32, %arg3: memref<16x32xf32, #tpu.memory_space<vmem>>, %arg4: memref<32x96xf32, #tpu.memory_space<vmem>>, %arg5: memref<1x96xf32, #tpu.memory_space<vmem>>, %arg6: memref<16x96xf32, #tpu.memory_space<vmem>>, %arg7: memref<16x96xf32, #tpu.memory_space<vmem>>) attributes {dimension_semantics = [#tpu.dimension_semantics<parallel>, #tpu.dimension_semantics<parallel>, #tpu.dimension_semantics<arbitrary>], iteration_bounds = array<i64: 1, 1, 1>, scalar_prefetch = 0 : i64, scratch_operands = 1 : i64, tpu.core_type = #tpu.core_type<tc>, window_params = [{transform_indices = @transform_0, window_bounds = array<i64: 16, 32>}, {transform_indices = @transform_1, window_bounds = array<i64: 32, 96>}, {transform_indices = @transform_2, window_bounds = array<i64: 1, 96>}, {transform_indices = @transform_3, window_bounds = array<i64: 16, 96>}]} {
    %c0_i32 = arith.constant 0 : i32
    %0 = arith.cmpi eq, %arg2, %c0_i32 : i32
    %1 = arith.extui %0 : i1 to i32
    %c0_i32_0 = arith.constant 0 : i32
    %2 = arith.cmpi ne, %1, %c0_i32_0 : i32
    scf.if %2 {
      %cst_10 = arith.constant 0.000000e+00 : f32
      %14 = vector.broadcast %cst_10 : f32 to vector<16x96xf32>
      %c0_11 = arith.constant 0 : index
      %c0_12 = arith.constant 0 : index
      %15 = vector.load %arg7[%c0_11, %c0_12] : memref<16x96xf32, #tpu.memory_space<vmem>>, vector<16x96xf32>
      tpu.vector_store %arg7[%c0_11, %c0_12], %14 {strides = array<i32>} : memref<16x96xf32, #tpu.memory_space<vmem>>, vector<16x96xf32>,
    } else {
    }
    %c0 = arith.constant 0 : index
    %c0_1 = arith.constant 0 : index
    %3 = vector.load %arg7[%c0, %c0_1] : memref<16x96xf32, #tpu.memory_space<vmem>>, vector<16x96xf32>
    %c0_2 = arith.constant 0 : index
    %c0_3 = arith.constant 0 : index
    %4 = vector.load %arg3[%c0_2, %c0_3] : memref<16x32xf32, #tpu.memory_space<vmem>>, vector<16x32xf32>
    %5 = arith.truncf %4 : vector<16x32xf32> to vector<16x32xbf16>
    %c0_4 = arith.constant 0 : index
    %c0_5 = arith.constant 0 : index
    %6 = vector.load %arg4[%c0_4, %c0_5] : memref<32x96xf32, #tpu.memory_space<vmem>>, vector<32x96xf32>
    %7 = arith.truncf %6 : vector<32x96xf32> to vector<32x96xbf16>
    %cst = arith.constant dense<0.000000e+00> : vector<16x96xf32>
    %8 = tpu.matmul %5, %7, %cst {dimension_numbers = #tpu.dot_dimension_numbers<[1], [0], [0], [1], [0, 0, 1, 1], [], []>} : vector<16x32xbf16>, vector<32x96xbf16>, vector<16x96xf32> -> vector<16x96xf32>
    %9 = arith.addf %3, %8 : vector<16x96xf32>
    %c0_6 = arith.constant 0 : index
    %c0_7 = arith.constant 0 : index
    %10 = vector.load %arg7[%c0_6, %c0_7] : memref<16x96xf32, #tpu.memory_space<vmem>>, vector<16x96xf32>
    tpu.vector_store %arg7[%c0_6, %c0_7], %9 {strides = array<i32>} : memref<16x96xf32, #tpu.memory_space<vmem>>, vector<16x96xf32>,
    %c0_i32_8 = arith.constant 0 : i32
    %11 = arith.cmpi eq, %arg2, %c0_i32_8 : i32
    %12 = arith.extui %11 : i1 to i32
    %c0_i32_9 = arith.constant 0 : i32
    %13 = arith.cmpi ne, %12, %c0_i32_9 : i32
    scf.if %13 {
      %c0_10 = arith.constant 0 : index
      %c0_11 = arith.constant 0 : index
      %14 = vector.load %arg7[%c0_10, %c0_11] : memref<16x96xf32, #tpu.memory_space<vmem>>, vector<16x96xf32>
      %c0_12 = arith.constant 0 : index
      %c0_13 = arith.constant 0 : index
      %15 = vector.load %arg5[%c0_12, %c0_13] : memref<1x96xf32, #tpu.memory_space<vmem>>, vector<1x96xf32>
      %16 = vector.broadcast %15 : vector<1x96xf32> to vector<16x96xf32>
      %17 = arith.addf %14, %16 : vector<16x96xf32>
      %c0_14 = arith.constant 0 : index
      %c0_15 = arith.constant 0 : index
      %18 = vector.load %arg6[%c0_14, %c0_15] : memref<16x96xf32, #tpu.memory_space<vmem>>, vector<16x96xf32>
      tpu.vector_store %arg6[%c0_14, %c0_15], %17 {strides = array<i32>} : memref<16x96xf32, #tpu.memory_space<vmem>>, vector<16x96xf32>,
    } else {
    }
    return
  }
  func.func @transform_0(%arg0: i32, %arg1: i32, %arg2: i32) -> (i32, i32) {
    %c0_i32 = arith.constant 0 : i32
    return %arg0, %arg2 : i32, i32
  }
  func.func @transform_1(%arg0: i32, %arg1: i32, %arg2: i32) -> (i32, i32) {
    %c0_i32 = arith.constant 0 : i32
    return %arg2, %arg1 : i32, i32
  }
  func.func @transform_2(%arg0: i32, %arg1: i32, %arg2: i32) -> (i32, i32) {
    %c0_i32 = arith.constant 0 : i32
    %c0_i32_0 = arith.constant 0 : i32
    return %c0_i32, %arg1 : i32, i32
  }
  func.func @transform_3(%arg0: i32, %arg1: i32, %arg2: i32) -> (i32, i32) {
    %c0_i32 = arith.constant 0 : i32
    return %arg0, %arg1 : i32, i32
  }
}

</mosaic_0001>

<llo_original>
// kernel: tpu_custom_call.1
$region0: #{tpu_custom_call.1}
  #allocation0 [shape = 'u32[]', space=smem, size = 0x4, offset = 0x4, fixed_abs, tag = 'smem constant byte address 0x4 - core index']
  #allocation1 [shape = 'u32[144,128]{1,0:T(1,128)}', space=vmem, size = 0x12000, scoped, tag = 'internal scratch']
  #allocation2 [shape = 'f32[16,96]{1,0:T(8,128)}', space=vmem, size = 0x2000, scoped, tag = 'scratch operand']
  %s0 = inlined_call_operand.hbm [shape: f32[16,32], index: 0, kind: input, shape index: {}]
  %s1 = inlined_call_operand.hbm [shape: f32[32,96], index: 1, kind: input, shape index: {}]
  %s2 = inlined_call_operand.vmem [shape: f32[1,96], index: 2, kind: input, shape index: {}]
  %s3 = inlined_call_operand.hbm [shape: f32[16,96], index: 3, kind: output, shape index: {}]
  %s4 = sld [smem:[#allocation0]]
  $region38: #{tpu_custom_call.1} parent=0
    _
  %s6 = ssub.s32 1, %s4
  %s7 = scalar_select 0, %s6, %s4
  $region1: #{tpu_custom_call.1} parent=0
    #allocation3 [shape = 'u8[8192]{0}', space=vmem, size = 0x2000, scoped, tag = 'input window, operand 0, single buffered']
    #allocation4 [shape = 's32[1]{0}', space=sflag, size = 0x4, scoped, tag = 'scoped memory for tpu_custom_call.1']
    #allocation5 [shape = 's32[1]{0}', space=sflag, size = 0x4, scoped, tag = 'scoped memory for tpu_custom_call.1']
    #allocation6 [shape = 'u8[16384]{0}', space=vmem, size = 0x4000, scoped, tag = 'input window, operand 1, single buffered']
    #allocation7 [shape = 's32[1]{0}', space=sflag, size = 0x4, scoped, tag = 'scoped memory for tpu_custom_call.1']
    #allocation8 [shape = 'u8[8192]{0}', space=vmem, size = 0x2000, scoped, tag = 'output window, operand 0, single buffered']
    %8 = vsyncpa [#allocation4], 0
    %9 = vsyncpa [#allocation7], 0
    %10 = vsyncpa [#allocation5], 0
    // Predicated region
    $region2: #{tpu_custom_call.1} parent=1 // pred_check
      _
    $region3: #{tpu_custom_call.1} parent=1 // pred_check_branch
      %12 = sbr.rel (0) target = $region5
    $region4: #{tpu_custom_call.1} parent=1 // pred_region
      %s14 = ssub.s32 256, 256
      %15 = vsyncadd [#allocation4], %s14
      %s16 = sshll.u32 [#allocation3], 4
      %s17 = int_to_ptr.vmem [resolvable:$true] %s16
      %22 = dma.hbm_to_vmem [thread:$0]  %s0, 256, %s17, [#allocation4], 128, 128, 8
    $region5: #{tpu_custom_call.1} parent=1 // pred_fallthru
      _
    // Predicated region
    $region6: #{tpu_custom_call.1} parent=1 // pred_check
      _
    $region7: #{tpu_custom_call.1} parent=1 // pred_check_branch
      %24 = sbr.rel (0) target = $region9
    $region8: #{tpu_custom_call.1} parent=1 // pred_region
      %s26 = ssub.s32 512, 512
      %27 = vsyncadd [#allocation7], %s26
      %s28 = sshll.u32 [#allocation6], 4
      %s29 = int_to_ptr.vmem [resolvable:$true] %s28
      %34 = dma.hbm_to_vmem [thread:$0]  %s1, 512, %s29, [#allocation7], 128, 128, 8
    $region9: #{tpu_custom_call.1} parent=1 // pred_fallthru
      _
    // Predicated region
    $region10: #{tpu_custom_call.1} parent=1 // pred_check
      _
    $region11: #{tpu_custom_call.1} parent=1 // pred_check_branch
      %36 = sbr.rel (0) target = $region13
    $region12: #{tpu_custom_call.1} parent=1 // pred_region
      _
    $region13: #{tpu_custom_call.1} parent=1 // pred_fallthru
      _
    // Predicated region
    $region14: #{tpu_custom_call.1} parent=1 // pred_check
      _
    $region15: #{tpu_custom_call.1} parent=1 // pred_check_branch
      %38 = sbr.rel (0) target = $region17
    $region16: #{tpu_custom_call.1} parent=1 // pred_region
      %39 = dma.done [#allocation4], 256
    $region17: #{tpu_custom_call.1} parent=1 // pred_fallthru
      _
    // Predicated region
    $region18: #{tpu_custom_call.1} parent=1 // pred_check
      _
    $region19: #{tpu_custom_call.1} parent=1 // pred_check_branch
      %41 = sbr.rel (0) target = $region21
    $region20: #{tpu_custom_call.1} parent=1 // pred_region
      %42 = dma.done [#allocation7], 512
    $region21: #{tpu_custom_call.1} parent=1 // pred_fallthru
      _
    %p44 = scmp.eq.s32.totalorder 0, 0
    // Predicated region
    $region22: #{tpu_custom_call.1} parent=1 // pred_check
      %p45 = pneg %p44
    $region23: #{tpu_custom_call.1} parent=1 // pred_check_branch
      %47 = sbr.rel (%p45) target = $region25
    $region24: #{tpu_custom_call.1} parent=1 // pred_region
      %vm48 = vcmask 785408
      %49 = vst.msk [vmem:[#allocation2] sm:$0xff] %vm48, 0.0
      %50 = vst.msk [vmem:[#allocation2 + $0x8] sm:$0xff] %vm48, 0.0
    $region25: #{tpu_custom_call.1} parent=1 // pred_fallthru
      _
    %v51 = vld [vmem:[#allocation2] sm:$0xff]
    %v52 = vld [vmem:[#allocation2 + $0x8] sm:$0xff]
    %v53 = vld [vmem:[#allocation3] sm:$0xff]
    %v54 = vld [vmem:[#allocation3 + $0x8] sm:$0xff]
    %v55 = vpack.c.bf16 %v54, %v53
    %v56 = vld [vmem:[#allocation6] sm:$0xff]
    %v57 = vld [vmem:[#allocation6 + $0x8] sm:$0xff]
    %v58 = vld [vmem:[#allocation6 + $0x10] sm:$0xff]
    %v59 = vld [vmem:[#allocation6 + $0x18] sm:$0xff]
    %v60 = vpack.c.bf16 %v57, %v56
    %v61 = vpack.c.bf16 %v59, %v58
    %vm62 = vcmask 261120
    %v64 = vsel %vm62, %v55, 0
    %66 = vmatprep.subr.bf16.mxu0 0
    %67 = vmatpush1.bf16.msra.mxu0 %v60
    %68 = vmatprep.subr.bf16.mxu0 0
    %69 = vmatpush1.bf16.msra.mxu0 %v61
    %70 = vmatprep.subr.bf16.mxu0 0
    %71 = vmatpush1.bf16.msra.mxu0 0
    %72 = vmatprep.subr.bf16.mxu0 0
    %73 = vmatpush1.bf16.msra.mxu0 0
    %74 = vmatprep.subr.bf16.mxu0 0
    %75 = vmatpush1.bf16.msra.mxu0 0
    %76 = vmatprep.subr.bf16.mxu0 0
    %77 = vmatpush1.bf16.msra.mxu0 0
    %78 = vmatprep.subr.bf16.mxu0 0
    %79 = vmatpush1.bf16.msra.mxu0 0
    %80 = vmatprep.subr.bf16.mxu0 0
    %81 = vmatpush1.bf16.msra.mxu0 0
    %82 = vmatprep.subr.bf16.mxu0 0
    %83 = vmatpush1.bf16.msra.mxu0 0
    %84 = vmatprep.subr.bf16.mxu0 0
    %85 = vmatpush1.bf16.msra.mxu0 0
    %86 = vmatprep.subr.bf16.mxu0 0
    %87 = vmatpush1.bf16.msra.mxu0 0
    %88 = vmatprep.subr.bf16.mxu0 0
    %89 = vmatpush1.bf16.msra.mxu0 0
    %90 = vmatprep.subr.bf16.mxu0 0
    %91 = vmatpush1.bf16.msra.mxu0 0
    %92 = vmatprep.subr.bf16.mxu0 0
    %93 = vmatpush1.bf16.msra.mxu0 0
    %94 = vmatprep.subr.bf16.mxu0 0
    %95 = vmatpush1.bf16.msra.mxu0 0
    %96 = vmatprep.subr.bf16.mxu0 0
    %97 = vmatpush1.bf16.msra.mxu0 0
    %98 = vmatprep.mubr.bf16.mxu0 0
    %99 = vmatmul.mubr.bf16.gmra.mrb[0].mxu0 %v64
    %v100 = vpop.f32.mrb[0].mxu0
    %v101 = vadd.f32 0.0, %v100
    %v102 = vpop.f32.mrb[0].mxu0
    %v103 = vpop.f32.mrb[0].mxu0
    %v104 = vadd.f32 0.0, %v103
    %v105 = vpop.f32.mrb[0].mxu0
    %106 = vdwg.mxu0
    %v107 = vadd.f32 %v51, %v101
    %v108 = vadd.f32 %v52, %v104
    %vm109 = vcmask 785408
    %110 = vst.msk [vmem:[#allocation2] sm:$0xff] %vm109, %v107
    %111 = vst.msk [vmem:[#allocation2 + $0x8] sm:$0xff] %vm109, %v108
    // Predicated region
    $region26: #{tpu_custom_call.1} parent=1 // pred_check
      %p112 = pneg %p44
    $region27: #{tpu_custom_call.1} parent=1 // pred_check_branch
      %114 = sbr.rel (%p112) target = $region29
    $region28: #{tpu_custom_call.1} parent=1 // pred_region
      %v115 = vld [vmem:[#allocation2] sm:$0xff]
      %v116 = vld [vmem:[#allocation2 + $0x8] sm:$0xff]
      %v117 = vld [vmem:[%s2] sm:$0x1]
      %v119 = vlaneseq
      %v120 = vshrl.u32 %v119, 7
      %v121 = vsub.s32 0, %v120
      %v122 = vrot.slane %v117, %v121
      %v124 = vadd.f32 %v115, %v122
      %v125 = vadd.f32 %v116, %v122
      %126 = vst.msk [vmem:[#allocation8] sm:$0xff] %vm109, %v124
      %127 = vst.msk [vmem:[#allocation8 + $0x8] sm:$0xff] %vm109, %v125
    $region29: #{tpu_custom_call.1} parent=1 // pred_fallthru
      _
    // Predicated region
    $region30: #{tpu_custom_call.1} parent=1 // pred_check
      _
    $region31: #{tpu_custom_call.1} parent=1 // pred_check_branch
      %129 = sbr.rel (0) target = $region33
    $region32: #{tpu_custom_call.1} parent=1 // pred_region
      %s131 = ssub.s32 256, 256
      %132 = vsyncadd [#allocation5], %s131
      %s133 = sshll.u32 [#allocation8], 4
      %s134 = int_to_ptr.vmem [resolvable:$true] %s133
      %139 = dma.vmem_to_hbm [thread:$0]  %s134, 256, %s3, [#allocation5], 128, 128, 8
    $region33: #{tpu_custom_call.1} parent=1 // pred_fallthru
      _
    // Predicated region
    $region34: #{tpu_custom_call.1} parent=1 // pred_check
      _
    $region35: #{tpu_custom_call.1} parent=1 // pred_check_branch
      %141 = sbr.rel (0) target = $region37
    $region36: #{tpu_custom_call.1} parent=1 // pred_region
      %142 = dma.done [#allocation5], 256
    $region37: #{tpu_custom_call.1} parent=1 // pred_fallthru
      _
    %143 = vsyncpa [#allocation4], 1
    %144 = vsyncpa [#allocation7], 1
    %145 = vsyncpa [#allocation5], 1

</llo_original>
